<compile_context>
chip_gen: v6e
topology: v6e:2x2x1
jax: 0.10.0
libtpu: 0.0.40
codegen_flags: <defaults>
</compile_context>

<pallas_src>
import functools

import jax
import jax.numpy as jnp
from jax.experimental import pallas as pl
from jax.experimental.pallas import tpu as pltpu


def _attention_kernel(*refs, n_heads, d_kv, causal, shared_source, emit_kv):
    """One grid step processes a (BT, S, d_model) batch tile end-to-end."""
    it = iter(refs)
    x_q_ref = None if shared_source else next(it)
    x_kv_ref = next(it)
    wqkv_ref = next(it)
    wo_ref = next(it)
    out_ref = next(it)
    k_out_ref = next(it) if emit_kv else None
    v_out_ref = next(it) if emit_kv else None

    inner = n_heads * d_kv
    wqkv = wqkv_ref[...]                       # (d_model, 3*inner), bf16
    wo = wo_ref[...]                           # (inner, d_model),   bf16
    cdt = wqkv.dtype                           # bf16 compute dtype on the MXU

    x_kv = x_kv_ref[...].astype(cdt)           # (BT, S_k, d_model)
    bt, s_k, d_model = x_kv.shape

    # --- fused QKV projection: one lane-dense matmul, bf16 operands / f32 accumulation ---
    if shared_source:
        rows = x_kv.reshape(bt * s_k, d_model)
        qkv = jnp.dot(rows, wqkv, preferred_element_type=jnp.float32)
        qkv = qkv.astype(cdt).reshape(bt, s_k, 3 * inner)
        q = qkv[:, :, :inner]
        k = qkv[:, :, inner:2 * inner]
        v = qkv[:, :, 2 * inner:]
        s_q = s_k
    else:
        # Different query / key-value sources: Q alone, K+V fused.
        x_q = x_q_ref[...].astype(cdt)
        s_q = x_q.shape[1]
        q = jnp.dot(x_q.reshape(bt * s_q, d_model), wqkv[:, :inner],
                    preferred_element_type=jnp.float32).astype(cdt).reshape(bt, s_q, inner)
        kv = jnp.dot(x_kv.reshape(bt * s_k, d_model), wqkv[:, inner:],
                     preferred_element_type=jnp.float32).astype(cdt).reshape(bt, s_k, 2 * inner)
        k = kv[:, :, :inner]
        v = kv[:, :, inner:]

    # Causal (torch.tril) mask hoisted out of the head loop (JAX does not CSE broadcasts).
    if causal:
        row = jax.lax.broadcasted_iota(jnp.int32, (s_q, s_k), 0)
        col = jax.lax.broadcasted_iota(jnp.int32, (s_q, s_k), 1)
        keep = row >= col                       # (S_q, S_k), broadcasts over the batch tile

    # Per-head attention (small static head count). Contexts stay as values and are
    # concatenated once -> no masked width-d_kv scratch stores, single output projection.
    ctx_heads = []
    for h in range(n_heads):
        lo, hi = h * d_kv, (h + 1) * d_kv
        q_h = q[:, :, lo:hi]                    # (BT, S_q, d_kv) bf16
        k_h = k[:, :, lo:hi]                    # (BT, S_k, d_kv) bf16
        v_h = v[:, :, lo:hi]                    # (BT, S_k, d_kv) bf16

        # scores = q @ k^T (batched over the batch tile), bf16 in / f32 out.
        scores = jnp.einsum('bqd,bkd->bqk', q_h, k_h,
                            preferred_element_type=jnp.float32)     # (BT, S_q, S_k)

        if causal:
            # torch.tril semantics: zero strictly-upper entries (NOT -inf), then softmax.
            scores = jnp.where(keep, scores, jnp.float32(0.0))

        # Softmax over last axis in f32 (matches scores.float() softmax in the module).
        m = jnp.max(scores, axis=-1, keepdims=True)
        e = jnp.exp(scores - m)
        attn = e * pl.reciprocal(jnp.sum(e, axis=-1, keepdims=True), approx=True)

        # Dropout on attn_weights: eval-mode dropout is the identity.
        ctx_heads.append(jnp.einsum('bqk,bkd->bqd', attn.astype(cdt), v_h,
                                    preferred_element_type=jnp.float32))

    # Single output projection over the full inner_dim contraction (bf16 MXU path).
    ctx = jnp.concatenate(ctx_heads, axis=-1).astype(cdt)           # (BT, S_q, inner)
    out = jnp.dot(ctx.reshape(bt * s_q, inner), wo,
                  preferred_element_type=jnp.float32)
    out_ref[...] = out.reshape(bt, s_q, d_model).astype(out_ref.dtype)

    if emit_kv:
        # Lane-dense present K/V (whole slab, one unmasked store each).
        k_out_ref[...] = k.astype(k_out_ref.dtype)
        v_out_ref[...] = v.astype(v_out_ref.dtype)


def prepare_attention_params(wq, wk, wv, wo, compute_dtype=jnp.bfloat16):
    """Weight plumbing paid ONCE per model: fuse Q|K|V along the output dim and cast to bf16."""
    w_qkv = jnp.concatenate([wq, wk, wv], axis=1).astype(compute_dtype)
    return w_qkv, wo.astype(compute_dtype)


def attention_forward(hidden_states, key_value_states, w_qkv, wo,
                      *, n_heads, d_kv, is_decoder, batch_tile=None):
    """Mirrors Attention.forward.

    Returns (attn_output, present_key_value_state); the latter is (key_states, value_states)
    shaped (B, n_heads, S_k, d_kv) if is_decoder else None.
    """
    # Source selection exactly as in the PyTorch module.
    q_src = hidden_states if not is_decoder else key_value_states
    kv_src = hidden_states if key_value_states is None else key_value_states
    shared = q_src is kv_src   # true for both practical code paths of the module

    b, s_q, d_model = q_src.shape
    _, s_k, _ = kv_src.shape
    inner_dim = n_heads * d_kv
    dtype = hidden_states.dtype
    emit_kv = bool(is_decoder)

    # Micro shapes: collapse the grid to one step (per-step overhead dominates wall-clock).
    # Real shapes: one batch per grid step so the batch axis can be sharded across cores.
    if batch_tile is None:
        batch_tile = b if (b * max(s_q, s_k) <= 1024) else 1
    assert b % batch_tile == 0
    grid = (b // batch_tile,)

    kernel = functools.partial(_attention_kernel, n_heads=n_heads, d_kv=d_kv,
                               causal=is_decoder, shared_source=shared, emit_kv=emit_kv)

    in_specs = []
    args = []
    if not shared:
        in_specs.append(pl.BlockSpec((batch_tile, s_q, d_model), lambda i: (i, 0, 0)))
        args.append(q_src)
    in_specs.append(pl.BlockSpec((batch_tile, s_k, d_model), lambda i: (i, 0, 0)))
    args.append(kv_src)
    in_specs += [
        pl.BlockSpec((d_model, 3 * inner_dim), lambda i: (0, 0)),   # fused W_qkv (bf16)
        pl.BlockSpec((inner_dim, d_model), lambda i: (0, 0)),       # Wo (bf16)
    ]

    out_shapes = [jax.ShapeDtypeStruct((b, s_q, d_model), dtype)]
    out_specs = [pl.BlockSpec((batch_tile, s_q, d_model), lambda i: (i, 0, 0))]
    if emit_kv:
        out_shapes += [jax.ShapeDtypeStruct((b, s_k, inner_dim), dtype)] * 2
        out_specs += [pl.BlockSpec((batch_tile, s_k, inner_dim), lambda i: (i, 0, 0))] * 2

    # Rough VMEM budget from actual buffer sizes (double-buffered streams + weights + live
    # intermediates), clamped so it stays within v7x's 64 MiB physical VMEM.
    itemsz = jnp.dtype(dtype).itemsize
    n_src = 1 if shared else 2
    stream_bytes = 2 * n_src * batch_tile * max(s_q, s_k) * d_model * itemsz
    stream_bytes += 2 * (d_model * 3 * inner_dim + inner_dim * d_model) * 2          # bf16 weights
    out_elems = batch_tile * s_q * d_model + (2 * batch_tile * s_k * inner_dim if emit_kv else 0)
    stream_bytes += 2 * out_elems * itemsz
    live_bytes = 4 * batch_tile * s_q * (3 * inner_dim + n_heads * s_k + 2 * inner_dim + d_model)
    vmem_limit = int(min(max(2 * (stream_bytes + live_bytes), 32 * 1024 * 1024),
                         48 * 1024 * 1024))

    outputs = pl.pallas_call(
        kernel,
        out_shape=out_shapes,
        grid_spec=pltpu.PrefetchScalarGridSpec(
            num_scalar_prefetch=0,
            grid=grid,
            in_specs=in_specs,
            out_specs=out_specs,
        ),
        compiler_params=pltpu.CompilerParams(
            dimension_semantics=("parallel",),
            vmem_limit_bytes=vmem_limit,
        ),
    )(*args, w_qkv, wo)

    if emit_kv:
        attn_output, k_dense, v_dense = outputs[0], outputs[1], outputs[2]
        # Layout plumbing (outside the kernel): (B, S_k, inner) -> (B, n_heads, S_k, d_kv)
        key_states = k_dense.reshape(b, s_k, n_heads, d_kv).transpose(0, 2, 1, 3)
        value_states = v_dense.reshape(b, s_k, n_heads, d_kv).transpose(0, 2, 1, 3)
        present = (key_states, value_states)
    else:
        attn_output = outputs[0]
        present = None
    return attn_output, present


def _attention_ref(hidden_states, key_value_states, wq, wk, wv, wo,
                   *, n_heads, d_kv, is_decoder):
    """Pure-JAX reference mirroring the PyTorch module (for correctness check)."""
    q_src = hidden_states if not is_decoder else key_value_states
    kv_src = hidden_states if key_value_states is None else key_value_states
    b, s_q, _ = q_src.shape
    s_k = kv_src.shape[1]

    def shape(x):
        return x.reshape(b, -1, n_heads, d_kv).transpose(0, 2, 1, 3)

    q = shape(q_src @ wq)
    k = shape(kv_src @ wk)
    v = shape(kv_src @ wv)
    scores = jnp.einsum('bhqd,bhkd->bhqk', q, k)
    if is_decoder:
        mask = jnp.tril(jnp.ones((s_q, s_k), dtype=bool))
        scores = jnp.where(mask, scores, jnp.zeros((), scores.dtype))
    attn_w = jax.nn.softmax(scores.astype(jnp.float32), axis=-1).astype(scores.dtype)
    out = jnp.einsum('bhqk,bhkd->bhqd', attn_w, v)
    out = out.transpose(0, 2, 1, 3).reshape(b, -1, n_heads * d_kv) @ wo
    present = (k, v) if is_decoder else None
    return out, present


if __name__ == "__main__":
    # Small config consistent with the module: d_model=32, d_kv=8, num_heads=4.
    B, S = 2, 8
    d_model, d_kv, n_heads = 32, 8, 4
    inner_dim = n_heads * d_kv

    key = jax.random.PRNGKey(0)
    kx, kq, kk, kv_, ko, kxk = jax.random.split(key, 6)

    hidden_states = jax.random.normal(kx, (B, S, d_model), dtype=jnp.float32)
    scale = 1.0 / jnp.sqrt(jnp.float32(d_model))
    wq = jax.random.uniform(kq, (d_model, inner_dim), jnp.float32, -scale, scale)
    wk = jax.random.uniform(kk, (d_model, inner_dim), jnp.float32, -scale, scale)
    wv = jax.random.uniform(kv_, (d_model, inner_dim), jnp.float32, -scale, scale)
    o_scale = 1.0 / jnp.sqrt(jnp.float32(inner_dim))
    wo = jax.random.uniform(ko, (inner_dim, d_model), jnp.float32, -o_scale, o_scale)

    # Fused / bf16 weights prepared once (not per forward call).
    w_qkv_f, wo_f = prepare_attention_params(wq, wk, wv, wo)

    # Tolerances account for bf16 MXU operands (f32 accumulation) + approx EUP reciprocal.
    ATOL = RTOL = 5e-2

    # Encoder path (is_decoder=False, key_value_states=None): no K/V outputs emitted.
    attn_out, present = attention_forward(
        hidden_states, None, w_qkv_f, wo_f,
        n_heads=n_heads, d_kv=d_kv, is_decoder=False)
    jax.block_until_ready(attn_out)
    assert attn_out.shape == (B, S, d_model)
    assert present is None

    ref_out, _ = _attention_ref(hidden_states, None, wq, wk, wv, wo,
                                n_heads=n_heads, d_kv=d_kv, is_decoder=False)
    assert jnp.allclose(attn_out, ref_out, atol=ATOL, rtol=RTOL), "encoder output mismatch"

    # Decoder path (is_decoder=True) with a separate source tensor.
    kv_states = jax.random.normal(kxk, (B, S, d_model), dtype=jnp.float32)
    attn_out_d, present_d = attention_forward(
        hidden_states, kv_states, w_qkv_f, wo_f,
        n_heads=n_heads, d_kv=d_kv, is_decoder=True)
    jax.block_until_ready(attn_out_d)
    assert attn_out_d.shape == (B, S, d_model)
    assert present_d[0].shape == (B, n_heads, S, d_kv)
    assert present_d[1].shape == (B, n_heads, S, d_kv)

    ref_out_d, ref_present_d = _attention_ref(
        hidden_states, kv_states, wq, wk, wv, wo,
        n_heads=n_heads, d_kv=d_kv, is_decoder=True)
    assert jnp.allclose(attn_out_d, ref_out_d, atol=ATOL, rtol=RTOL), "decoder output mismatch"
    assert jnp.allclose(present_d[0], ref_present_d[0], atol=ATOL, rtol=RTOL), "key states mismatch"
    assert jnp.allclose(present_d[1], ref_present_d[1], atol=ATOL, rtol=RTOL), "value states mismatch"

    print("KERNEL_OK")
</pallas_src>

<mosaic_0001>
module attributes {stable_mosaic.version = 11 : i64} {
  func.func @_attention_kernel(%arg0: i32, %arg1: memref<2x8x32xf32, #tpu.memory_space<vmem>>, %arg2: memref<32x96xbf16, #tpu.memory_space<vmem>>, %arg3: memref<32x32xbf16, #tpu.memory_space<vmem>>, %arg4: memref<2x8x32xf32, #tpu.memory_space<vmem>>) attributes {dimension_semantics = [#tpu.dimension_semantics<parallel>], iteration_bounds = array<i64: 1>, scalar_prefetch = 0 : i64, scratch_operands = 0 : i64, tpu.core_type = #tpu.core_type<tc>, window_params = [{transform_indices = @transform_0, window_bounds = array<i64: 2, 8, 32>}, {pipeline_mode = #tpu.pipeline_mode<synchronous>, transform_indices = @transform_1, window_bounds = array<i64: 32, 96>}, {pipeline_mode = #tpu.pipeline_mode<synchronous>, transform_indices = @transform_2, window_bounds = array<i64: 32, 32>}, {transform_indices = @transform_3, window_bounds = array<i64: 2, 8, 32>}]} {
    %c0 = arith.constant 0 : index
    %c0_0 = arith.constant 0 : index
    %0 = vector.load %arg2[%c0, %c0_0] : memref<32x96xbf16, #tpu.memory_space<vmem>>, vector<32x96xbf16>
    %c0_1 = arith.constant 0 : index
    %c0_2 = arith.constant 0 : index
    %1 = vector.load %arg3[%c0_1, %c0_2] : memref<32x32xbf16, #tpu.memory_space<vmem>>, vector<32x32xbf16>
    %c0_3 = arith.constant 0 : index
    %c0_4 = arith.constant 0 : index
    %c0_5 = arith.constant 0 : index
    %2 = vector.load %arg1[%c0_3, %c0_4, %c0_5] : memref<2x8x32xf32, #tpu.memory_space<vmem>>, vector<2x8x32xf32>
    %3 = arith.truncf %2 : vector<2x8x32xf32> to vector<2x8x32xbf16>
    %4 = vector.shape_cast %3 : vector<2x8x32xbf16> to vector<16x32xbf16>
    %cst = arith.constant dense<0.000000e+00> : vector<16x96xf32>
    %5 = tpu.matmul %4, %0, %cst {dimension_numbers = #tpu.dot_dimension_numbers<[1], [0], [0], [1], [0, 0, 1, 1], [], []>} : vector<16x32xbf16>, vector<32x96xbf16>, vector<16x96xf32> -> vector<16x96xf32>
    %6 = arith.truncf %5 : vector<16x96xf32> to vector<16x96xbf16>
    %7 = vector.shape_cast %6 : vector<16x96xbf16> to vector<2x8x96xbf16>
    %8 = vector.extract_strided_slice %7 {offsets = [0, 0, 0], sizes = [2, 8, 32], strides = [1, 1, 1]} : vector<2x8x96xbf16> to vector<2x8x32xbf16>
    %9 = vector.extract_strided_slice %7 {offsets = [0, 0, 32], sizes = [2, 8, 32], strides = [1, 1, 1]} : vector<2x8x96xbf16> to vector<2x8x32xbf16>
    %10 = vector.extract_strided_slice %7 {offsets = [0, 0, 64], sizes = [2, 8, 32], strides = [1, 1, 1]} : vector<2x8x96xbf16> to vector<2x8x32xbf16>
    %11 = vector.extract_strided_slice %8 {offsets = [0, 0, 0], sizes = [2, 8, 8], strides = [1, 1, 1]} : vector<2x8x32xbf16> to vector<2x8x8xbf16>
    %12 = vector.extract_strided_slice %9 {offsets = [0, 0, 0], sizes = [2, 8, 8], strides = [1, 1, 1]} : vector<2x8x32xbf16> to vector<2x8x8xbf16>
    %13 = vector.extract_strided_slice %10 {offsets = [0, 0, 0], sizes = [2, 8, 8], strides = [1, 1, 1]} : vector<2x8x32xbf16> to vector<2x8x8xbf16>
    "tpu.trace_start"() <{level = 10 : i32, message = "bqd,bkd->bqk"}> : () -> ()
    %cst_6 = arith.constant dense<0.000000e+00> : vector<2x8x8xf32>
    %14 = tpu.matmul %11, %12, %cst_6 {dimension_numbers = #tpu.dot_dimension_numbers<[2], [2], [1], [1], [0, 0, 0, 1, 1, 1], [0], [0]>} : vector<2x8x8xbf16>, vector<2x8x8xbf16>, vector<2x8x8xf32> -> vector<2x8x8xf32>
    "tpu.trace_stop"() : () -> ()
    %cst_7 = arith.constant dense<0xFF800000> : vector<2x8xf32>
    %15 = vector.multi_reduction <maximumf>, %14, %cst_7 [2] : vector<2x8x8xf32> to vector<2x8xf32>
    %16 = vector.shape_cast %15 : vector<2x8xf32> to vector<2x8x1xf32>
    %17 = vector.broadcast %16 : vector<2x8x1xf32> to vector<2x8x8xf32>
    %18 = arith.subf %14, %17 : vector<2x8x8xf32>
    %19 = math.exp %18 : vector<2x8x8xf32>
    %cst_8 = arith.constant dense<0.000000e+00> : vector<2x8xf32>
    %20 = vector.multi_reduction <add>, %19, %cst_8 [2] : vector<2x8x8xf32> to vector<2x8xf32>
    %21 = vector.shape_cast %20 : vector<2x8xf32> to vector<2x8x1xf32>
    %22 = tpu.reciprocal %21 {approx = true} : vector<2x8x1xf32> -> vector<2x8x1xf32>
    %23 = vector.broadcast %22 : vector<2x8x1xf32> to vector<2x8x8xf32>
    %24 = arith.mulf %19, %23 : vector<2x8x8xf32>
    %25 = arith.truncf %24 : vector<2x8x8xf32> to vector<2x8x8xbf16>
    "tpu.trace_start"() <{level = 10 : i32, message = "bqk,bkd->bqd"}> : () -> ()
    %cst_9 = arith.constant dense<0.000000e+00> : vector<2x8x8xf32>
    %26 = tpu.matmul %25, %13, %cst_9 {dimension_numbers = #tpu.dot_dimension_numbers<[2], [1], [1], [2], [0, 0, 0, 1, 1, 2], [0], [0]>} : vector<2x8x8xbf16>, vector<2x8x8xbf16>, vector<2x8x8xf32> -> vector<2x8x8xf32>
    "tpu.trace_stop"() : () -> ()
    %27 = vector.extract_strided_slice %8 {offsets = [0, 0, 8], sizes = [2, 8, 8], strides = [1, 1, 1]} : vector<2x8x32xbf16> to vector<2x8x8xbf16>
    %28 = vector.extract_strided_slice %9 {offsets = [0, 0, 8], sizes = [2, 8, 8], strides = [1, 1, 1]} : vector<2x8x32xbf16> to vector<2x8x8xbf16>
    %29 = vector.extract_strided_slice %10 {offsets = [0, 0, 8], sizes = [2, 8, 8], strides = [1, 1, 1]} : vector<2x8x32xbf16> to vector<2x8x8xbf16>
    "tpu.trace_start"() <{level = 10 : i32, message = "bqd,bkd->bqk"}> : () -> ()
    %cst_10 = arith.constant dense<0.000000e+00> : vector<2x8x8xf32>
    %30 = tpu.matmul %27, %28, %cst_10 {dimension_numbers = #tpu.dot_dimension_numbers<[2], [2], [1], [1], [0, 0, 0, 1, 1, 1], [0], [0]>} : vector<2x8x8xbf16>, vector<2x8x8xbf16>, vector<2x8x8xf32> -> vector<2x8x8xf32>
    "tpu.trace_stop"() : () -> ()
    %cst_11 = arith.constant dense<0xFF800000> : vector<2x8xf32>
    %31 = vector.multi_reduction <maximumf>, %30, %cst_11 [2] : vector<2x8x8xf32> to vector<2x8xf32>
    %32 = vector.shape_cast %31 : vector<2x8xf32> to vector<2x8x1xf32>
    %33 = vector.broadcast %32 : vector<2x8x1xf32> to vector<2x8x8xf32>
    %34 = arith.subf %30, %33 : vector<2x8x8xf32>
    %35 = math.exp %34 : vector<2x8x8xf32>
    %cst_12 = arith.constant dense<0.000000e+00> : vector<2x8xf32>
    %36 = vector.multi_reduction <add>, %35, %cst_12 [2] : vector<2x8x8xf32> to vector<2x8xf32>
    %37 = vector.shape_cast %36 : vector<2x8xf32> to vector<2x8x1xf32>
    %38 = tpu.reciprocal %37 {approx = true} : vector<2x8x1xf32> -> vector<2x8x1xf32>
    %39 = vector.broadcast %38 : vector<2x8x1xf32> to vector<2x8x8xf32>
    %40 = arith.mulf %35, %39 : vector<2x8x8xf32>
    %41 = arith.truncf %40 : vector<2x8x8xf32> to vector<2x8x8xbf16>
    "tpu.trace_start"() <{level = 10 : i32, message = "bqk,bkd->bqd"}> : () -> ()
    %cst_13 = arith.constant dense<0.000000e+00> : vector<2x8x8xf32>
    %42 = tpu.matmul %41, %29, %cst_13 {dimension_numbers = #tpu.dot_dimension_numbers<[2], [1], [1], [2], [0, 0, 0, 1, 1, 2], [0], [0]>} : vector<2x8x8xbf16>, vector<2x8x8xbf16>, vector<2x8x8xf32> -> vector<2x8x8xf32>
    "tpu.trace_stop"() : () -> ()
    %43 = vector.extract_strided_slice %8 {offsets = [0, 0, 16], sizes = [2, 8, 8], strides = [1, 1, 1]} : vector<2x8x32xbf16> to vector<2x8x8xbf16>
    %44 = vector.extract_strided_slice %9 {offsets = [0, 0, 16], sizes = [2, 8, 8], strides = [1, 1, 1]} : vector<2x8x32xbf16> to vector<2x8x8xbf16>
    %45 = vector.extract_strided_slice %10 {offsets = [0, 0, 16], sizes = [2, 8, 8], strides = [1, 1, 1]} : vector<2x8x32xbf16> to vector<2x8x8xbf16>
    "tpu.trace_start"() <{level = 10 : i32, message = "bqd,bkd->bqk"}> : () -> ()
    %cst_14 = arith.constant dense<0.000000e+00> : vector<2x8x8xf32>
    %46 = tpu.matmul %43, %44, %cst_14 {dimension_numbers = #tpu.dot_dimension_numbers<[2], [2], [1], [1], [0, 0, 0, 1, 1, 1], [0], [0]>} : vector<2x8x8xbf16>, vector<2x8x8xbf16>, vector<2x8x8xf32> -> vector<2x8x8xf32>
    "tpu.trace_stop"() : () -> ()
    %cst_15 = arith.constant dense<0xFF800000> : vector<2x8xf32>
    %47 = vector.multi_reduction <maximumf>, %46, %cst_15 [2] : vector<2x8x8xf32> to vector<2x8xf32>
    %48 = vector.shape_cast %47 : vector<2x8xf32> to vector<2x8x1xf32>
    %49 = vector.broadcast %48 : vector<2x8x1xf32> to vector<2x8x8xf32>
    %50 = arith.subf %46, %49 : vector<2x8x8xf32>
    %51 = math.exp %50 : vector<2x8x8xf32>
    %cst_16 = arith.constant dense<0.000000e+00> : vector<2x8xf32>
    %52 = vector.multi_reduction <add>, %51, %cst_16 [2] : vector<2x8x8xf32> to vector<2x8xf32>
    %53 = vector.shape_cast %52 : vector<2x8xf32> to vector<2x8x1xf32>
    %54 = tpu.reciprocal %53 {approx = true} : vector<2x8x1xf32> -> vector<2x8x1xf32>
    %55 = vector.broadcast %54 : vector<2x8x1xf32> to vector<2x8x8xf32>
    %56 = arith.mulf %51, %55 : vector<2x8x8xf32>
    %57 = arith.truncf %56 : vector<2x8x8xf32> to vector<2x8x8xbf16>
    "tpu.trace_start"() <{level = 10 : i32, message = "bqk,bkd->bqd"}> : () -> ()
    %cst_17 = arith.constant dense<0.000000e+00> : vector<2x8x8xf32>
    %58 = tpu.matmul %57, %45, %cst_17 {dimension_numbers = #tpu.dot_dimension_numbers<[2], [1], [1], [2], [0, 0, 0, 1, 1, 2], [0], [0]>} : vector<2x8x8xbf16>, vector<2x8x8xbf16>, vector<2x8x8xf32> -> vector<2x8x8xf32>
    "tpu.trace_stop"() : () -> ()
    %59 = vector.extract_strided_slice %8 {offsets = [0, 0, 24], sizes = [2, 8, 8], strides = [1, 1, 1]} : vector<2x8x32xbf16> to vector<2x8x8xbf16>
    %60 = vector.extract_strided_slice %9 {offsets = [0, 0, 24], sizes = [2, 8, 8], strides = [1, 1, 1]} : vector<2x8x32xbf16> to vector<2x8x8xbf16>
    %61 = vector.extract_strided_slice %10 {offsets = [0, 0, 24], sizes = [2, 8, 8], strides = [1, 1, 1]} : vector<2x8x32xbf16> to vector<2x8x8xbf16>
    "tpu.trace_start"() <{level = 10 : i32, message = "bqd,bkd->bqk"}> : () -> ()
    %cst_18 = arith.constant dense<0.000000e+00> : vector<2x8x8xf32>
    %62 = tpu.matmul %59, %60, %cst_18 {dimension_numbers = #tpu.dot_dimension_numbers<[2], [2], [1], [1], [0, 0, 0, 1, 1, 1], [0], [0]>} : vector<2x8x8xbf16>, vector<2x8x8xbf16>, vector<2x8x8xf32> -> vector<2x8x8xf32>
    "tpu.trace_stop"() : () -> ()
    %cst_19 = arith.constant dense<0xFF800000> : vector<2x8xf32>
    %63 = vector.multi_reduction <maximumf>, %62, %cst_19 [2] : vector<2x8x8xf32> to vector<2x8xf32>
    %64 = vector.shape_cast %63 : vector<2x8xf32> to vector<2x8x1xf32>
    %65 = vector.broadcast %64 : vector<2x8x1xf32> to vector<2x8x8xf32>
    %66 = arith.subf %62, %65 : vector<2x8x8xf32>
    %67 = math.exp %66 : vector<2x8x8xf32>
    %cst_20 = arith.constant dense<0.000000e+00> : vector<2x8xf32>
    %68 = vector.multi_reduction <add>, %67, %cst_20 [2] : vector<2x8x8xf32> to vector<2x8xf32>
    %69 = vector.shape_cast %68 : vector<2x8xf32> to vector<2x8x1xf32>
    %70 = tpu.reciprocal %69 {approx = true} : vector<2x8x1xf32> -> vector<2x8x1xf32>
    %71 = vector.broadcast %70 : vector<2x8x1xf32> to vector<2x8x8xf32>
    %72 = arith.mulf %67, %71 : vector<2x8x8xf32>
    %73 = arith.truncf %72 : vector<2x8x8xf32> to vector<2x8x8xbf16>
    "tpu.trace_start"() <{level = 10 : i32, message = "bqk,bkd->bqd"}> : () -> ()
    %cst_21 = arith.constant dense<0.000000e+00> : vector<2x8x8xf32>
    %74 = tpu.matmul %73, %61, %cst_21 {dimension_numbers = #tpu.dot_dimension_numbers<[2], [1], [1], [2], [0, 0, 0, 1, 1, 2], [0], [0]>} : vector<2x8x8xbf16>, vector<2x8x8xbf16>, vector<2x8x8xf32> -> vector<2x8x8xf32>
    "tpu.trace_stop"() : () -> ()
    %75 = tpu.concatenate %26, %42, %58, %74 in 2 : vector<2x8x8xf32>, vector<2x8x8xf32>, vector<2x8x8xf32>, vector<2x8x8xf32> -> vector<2x8x32xf32>
    %76 = arith.truncf %75 : vector<2x8x32xf32> to vector<2x8x32xbf16>
    %77 = vector.shape_cast %76 : vector<2x8x32xbf16> to vector<16x32xbf16>
    %cst_22 = arith.constant dense<0.000000e+00> : vector<16x32xf32>
    %78 = tpu.matmul %77, %1, %cst_22 {dimension_numbers = #tpu.dot_dimension_numbers<[1], [0], [0], [1], [0, 0, 1, 1], [], []>} : vector<16x32xbf16>, vector<32x32xbf16>, vector<16x32xf32> -> vector<16x32xf32>
    %79 = vector.shape_cast %78 : vector<16x32xf32> to vector<2x8x32xf32>
    %c0_23 = arith.constant 0 : index
    %c0_24 = arith.constant 0 : index
    %c0_25 = arith.constant 0 : index
    %80 = vector.load %arg4[%c0_23, %c0_24, %c0_25] : memref<2x8x32xf32, #tpu.memory_space<vmem>>, vector<2x8x32xf32>
    tpu.vector_store %arg4[%c0_23, %c0_24, %c0_25], %79 {strides = array<i32>} : memref<2x8x32xf32, #tpu.memory_space<vmem>>, vector<2x8x32xf32>,
    return
  }
  func.func @transform_0(%arg0: i32) -> (i32, i32, i32) {
    %c0_i32 = arith.constant 0 : i32
    %c0_i32_0 = arith.constant 0 : i32
    %c0_i32_1 = arith.constant 0 : i32
    return %arg0, %c0_i32, %c0_i32_0 : i32, i32, i32
  }
  func.func @transform_1(%arg0: i32) -> (i32, i32) {
    %c0_i32 = arith.constant 0 : i32
    %c0_i32_0 = arith.constant 0 : i32
    %c0_i32_1 = arith.constant 0 : i32
    return %c0_i32, %c0_i32_0 : i32, i32
  }
  func.func @transform_2(%arg0: i32) -> (i32, i32) {
    %c0_i32 = arith.constant 0 : i32
    %c0_i32_0 = arith.constant 0 : i32
    %c0_i32_1 = arith.constant 0 : i32
    return %c0_i32, %c0_i32_0 : i32, i32
  }
  func.func @transform_3(%arg0: i32) -> (i32, i32, i32) {
    %c0_i32 = arith.constant 0 : i32
    %c0_i32_0 = arith.constant 0 : i32
    %c0_i32_1 = arith.constant 0 : i32
    return %arg0, %c0_i32, %c0_i32_0 : i32, i32, i32
  }
}

</mosaic_0001>

<llo_original>
// kernel: tpu_custom_call.1
$region0: #{tpu_custom_call.1}
  #allocation0 [shape = 'u32[]', space=smem, size = 0x4, offset = 0x4, fixed_abs, tag = 'smem constant byte address 0x4 - core index']
  #allocation1 [shape = 'u32[144,128]{1,0:T(1,128)}', space=vmem, size = 0x12000, scoped, tag = 'internal scratch']
  %s0 = inlined_call_operand.hbm [shape: f32[2,8,32], index: 0, kind: input, shape index: {}]
  %s1 = inlined_call_operand.hbm [shape: bf16[32,96], index: 1, kind: input, shape index: {}]
  %s2 = inlined_call_operand.hbm [shape: bf16[32,32], index: 2, kind: input, shape index: {}]
  %s3 = inlined_call_operand.hbm [shape: f32[2,8,32], index: 3, kind: output, shape index: {}]
  %s4 = sld [smem:[#allocation0]]
  $region34: #{tpu_custom_call.1} parent=0
    _
  %s6 = ssub.s32 1, %s4
  %s7 = scalar_select 0, %s6, %s4
  $region1: #{tpu_custom_call.1} parent=0
    #allocation2 [shape = 'u8[8192]{0}', space=vmem, size = 0x2000, scoped, tag = 'input window, operand 0, single buffered']
    #allocation3 [shape = 's32[1]{0}', space=sflag, size = 0x4, scoped, tag = 'scoped memory for tpu_custom_call.1']
    #allocation4 [shape = 's32[1]{0}', space=sflag, size = 0x4, scoped, tag = 'scoped memory for tpu_custom_call.1']
    #allocation5 [shape = 'u8[8192]{0}', space=vmem, size = 0x2000, scoped, tag = 'input window, operand 1, single buffered']
    #allocation6 [shape = 's32[1]{0}', space=sflag, size = 0x4, scoped, tag = 'scoped memory for tpu_custom_call.1']
    #allocation7 [shape = 'u8[8192]{0}', space=vmem, size = 0x2000, scoped, tag = 'input window, operand 2, single buffered']
    #allocation8 [shape = 'u8[8192]{0}', space=vmem, size = 0x2000, scoped, tag = 'output window, operand 0, single buffered']
    %8 = vsyncpa [#allocation3], 0
    %9 = vsyncpa [#allocation6], 0
    %10 = vsyncpa [#allocation4], 0
    // Predicated region
    $region2: #{tpu_custom_call.1} parent=1 // pred_check
      _
    $region3: #{tpu_custom_call.1} parent=1 // pred_check_branch
      %12 = sbr.rel (0) target = $region5
    $region4: #{tpu_custom_call.1} parent=1 // pred_region
      %s14 = ssub.s32 256, 256
      %15 = vsyncadd [#allocation3], %s14
      %s16 = sshll.u32 [#allocation2], 4
      %s17 = int_to_ptr.vmem [resolvable:$true] %s16
      %22 = dma.hbm_to_vmem [thread:$0]  %s0, 256, %s17, [#allocation3], 128, 128, 8
    $region5: #{tpu_custom_call.1} parent=1 // pred_fallthru
      _
    // Predicated region
    $region6: #{tpu_custom_call.1} parent=1 // pred_check
      _
    $region7: #{tpu_custom_call.1} parent=1 // pred_check_branch
      %24 = sbr.rel (0) target = $region9
    $region8: #{tpu_custom_call.1} parent=1 // pred_region
      %s26 = ssub.s32 256, 256
      %27 = vsyncadd [#allocation6], %s26
      %s28 = sshll.u32 [#allocation5], 4
      %s29 = int_to_ptr.vmem [resolvable:$true] %s28
      %34 = dma.hbm_to_vmem [thread:$0]  %s1, 256, %s29, [#allocation6], 64, 64, 4
    $region9: #{tpu_custom_call.1} parent=1 // pred_fallthru
      _
    // Predicated region
    $region10: #{tpu_custom_call.1} parent=1 // pred_check
      _
    $region11: #{tpu_custom_call.1} parent=1 // pred_check_branch
      %36 = sbr.rel (0) target = $region13
    $region12: #{tpu_custom_call.1} parent=1 // pred_region
      %s38 = ssub.s32 256, 256
      %39 = vsyncadd [#allocation6], %s38
      %s40 = sshll.u32 [#allocation7], 4
      %s41 = int_to_ptr.vmem [resolvable:$true] %s40
      %46 = dma.hbm_to_vmem [thread:$0]  %s2, 256, %s41, [#allocation6], 64, 64, 4
    $region13: #{tpu_custom_call.1} parent=1 // pred_fallthru
      _
    // Predicated region
    $region14: #{tpu_custom_call.1} parent=1 // pred_check
      _
    $region15: #{tpu_custom_call.1} parent=1 // pred_check_branch
      %48 = sbr.rel (0) target = $region17
    $region16: #{tpu_custom_call.1} parent=1 // pred_region
      %49 = dma.done [#allocation3], 256
    $region17: #{tpu_custom_call.1} parent=1 // pred_fallthru
      _
    // Predicated region
    $region18: #{tpu_custom_call.1} parent=1 // pred_check
      _
    $region19: #{tpu_custom_call.1} parent=1 // pred_check_branch
      %51 = sbr.rel (0) target = $region21
    $region20: #{tpu_custom_call.1} parent=1 // pred_region
      %52 = dma.done [#allocation6], 256
    $region21: #{tpu_custom_call.1} parent=1 // pred_fallthru
      _
    // Predicated region
    $region22: #{tpu_custom_call.1} parent=1 // pred_check
      _
    $region23: #{tpu_custom_call.1} parent=1 // pred_check_branch
      %54 = sbr.rel (0) target = $region25
    $region24: #{tpu_custom_call.1} parent=1 // pred_region
      %55 = dma.done [#allocation6], 256
    $region25: #{tpu_custom_call.1} parent=1 // pred_fallthru
      _
    %v57 = vld [vmem:[#allocation5] sm:$0xf]
    %v58 = vld [vmem:[#allocation5 + $0x4] sm:$0xf]
    %v59 = vld [vmem:[#allocation5 + $0x8] sm:$0xf]
    %v60 = vld [vmem:[#allocation5 + $0xc] sm:$0xf]
    %v61 = vld [vmem:[#allocation7] sm:$0xf]
    %v62 = vld [vmem:[#allocation7 + $0x4] sm:$0xf]
    %v63 = vld [vmem:[#allocation7 + $0x8] sm:$0xf]
    %v64 = vld [vmem:[#allocation7 + $0xc] sm:$0xf]
    %v65 = vld [vmem:[#allocation2] sm:$0xff]
    %v66 = vld [vmem:[#allocation2 + $0x8] sm:$0xff]
    %v67 = vpack.c.bf16 %v65, %v65
    %v68 = vpack.c.bf16 %v66, %v66
    %v71 = vunpack.c.l.b16 %v67
    %v72 = vunpack.c.l.b16 %v68
    %v73 = vpack.c.b16 %v72, %v71
    %v78 = vunpack.c.l.b16 %v57
    %v79 = vunpack.c.l.b16 %v58
    %v80 = vunpack.c.l.b16 %v59
    %v81 = vunpack.c.l.b16 %v60
    %v82 = vpack.c.b16 %v79, %v78
    %v83 = vpack.c.b16 %v81, %v80
    %vm86 = vcmask 261120
    %v88 = vsel %vm86, %v73, 0
    %90 = vmatprep.subr.bf16.mxu0 0
    %91 = vmatpush1.bf16.msra.mxu0 0
    %92 = vmatprep.subr.bf16.mxu0 0
    %93 = vmatpush1.bf16.msra.mxu0 0
    %94 = vmatprep.subr.bf16.mxu0 0
    %95 = vmatpush1.bf16.msra.mxu0 0
    %96 = vmatprep.subr.bf16.mxu0 0
    %97 = vmatpush1.bf16.msra.mxu0 0
    %98 = vmatprep.subr.bf16.mxu0 0
    %99 = vmatpush1.bf16.msra.mxu0 0
    %100 = vmatprep.subr.bf16.mxu0 0
    %101 = vmatpush1.bf16.msra.mxu0 0
    %102 = vmatprep.subr.bf16.mxu0 0
    %103 = vmatpush1.bf16.msra.mxu0 %v83
    %104 = vmatprep.subr.bf16.mxu0 0
    %105 = vmatpush1.bf16.msra.mxu0 %v82
    %106 = vmatprep.subr.bf16.mxu0 0
    %107 = vmatpush2.bf16.msra.mxu0 0
    %108 = vmatprep.subr.bf16.mxu0 0
    %109 = vmatpush2.bf16.msra.mxu0 0
    %110 = vmatprep.subr.bf16.mxu0 0
    %111 = vmatpush2.bf16.msra.mxu0 0
    %112 = vmatprep.subr.bf16.mxu0 0
    %113 = vmatpush2.bf16.msra.mxu0 0
    %114 = vmatprep.subr.bf16.mxu0 0
    %115 = vmatpush2.bf16.msra.mxu0 0
    %116 = vmatprep.subr.bf16.mxu0 0
    %117 = vmatpush2.bf16.msra.mxu0 0
    %118 = vmatprep.subr.bf16.mxu0 0
    %119 = vmatpush2.bf16.msra.mxu0 0
    %120 = vmatprep.subr.bf16.mxu0 0
    %121 = vmatpush2.bf16.msra.mxu0 0
    %122 = vmatprep.mubr.bf16.mxu0 0
    %123 = vmatmul.mubr.bf16.gmra.mxu0 %v88
    %v124 = vpop.f32.mrf.mxu0
    %v125 = vadd.f32 0.0, %v124
    %v126 = vpop.f32.mrf.mxu0
    %v127 = vpop.f32.mrf.mxu0
    %v128 = vadd.f32 0.0, %v127
    %v129 = vpop.f32.mrf.mxu0
    %130 = vdwg.mxu0
    %v131 = vpack.c.bf16 %v128, %v125
    %v133 = vunpack.c.l.b16 %v131
    %v134 = vunpack.c.h.b16 %v131
    %v135 = vpack.c.b16 %v133, %v133
    %v136 = vpack.c.b16 %v134, %v134
    %137 = vrot.lane.b32.xlu0 %v135, 96
    %v138 = vpop.permute.xlu0 %137
    %vm139 = vcmask 64512
    %v141 = vsel %vm139, %v135, 0
    %v144 = vsel %vm139, %v138, 0
    %146 = vmatprep.subr.bf16.mxu0 0
    %147 = vmatpush1.bf16.xpose.msra.mxu0 0
    %148 = vmatprep.subr.bf16.mxu0 0
    %149 = vmatpush1.bf16.xpose.msra.mxu0 0
    %150 = vmatprep.subr.bf16.mxu0 0
    %151 = vmatpush1.bf16.xpose.msra.mxu0 0
    %152 = vmatprep.subr.bf16.mxu0 0
    %153 = vmatpush1.bf16.xpose.msra.mxu0 0
    %154 = vmatprep.subr.bf16.mxu0 0
    %155 = vmatpush1.bf16.xpose.msra.mxu0 0
    %156 = vmatprep.subr.bf16.mxu0 0
    %157 = vmatpush1.bf16.xpose.msra.mxu0 0
    %158 = vmatprep.subr.bf16.mxu0 0
    %159 = vmatpush1.bf16.xpose.msra.mxu0 0
    %160 = vmatprep.subr.bf16.mxu0 0
    %161 = vmatpush1.bf16.xpose.msra.mxu0 %v144
    %162 = vmatprep.subr.bf16.mxu0 0
    %163 = vmatpush2.bf16.xpose.msra.mxu0 0
    %164 = vmatprep.subr.bf16.mxu0 0
    %165 = vmatpush2.bf16.xpose.msra.mxu0 0
    %166 = vmatprep.subr.bf16.mxu0 0
    %167 = vmatpush2.bf16.xpose.msra.mxu0 0
    %168 = vmatprep.subr.bf16.mxu0 0
    %169 = vmatpush2.bf16.xpose.msra.mxu0 0
    %170 = vmatprep.subr.bf16.mxu0 0
    %171 = vmatpush2.bf16.xpose.msra.mxu0 0
    %172 = vmatprep.subr.bf16.mxu0 0
    %173 = vmatpush2.bf16.xpose.msra.mxu0 0
    %174 = vmatprep.subr.bf16.mxu0 0
    %175 = vmatpush2.bf16.xpose.msra.mxu0 0
    %176 = vmatprep.subr.bf16.mxu0 0
    %177 = vmatpush2.bf16.xpose.msra.mxu0 0
    %178 = vmatprep.mubr.bf16.mxu0 0
    %179 = vmatmul.mubr.bf16.gmra.mxu0 %v141
    %v180 = vpop.f32.mrf.mxu0
    %v181 = vadd.f32 0.0, %v180
    %v182 = vpop.f32.mrf.mxu0
    %v183 = vpop.f32.mrf.mxu0
    %v184 = vpop.f32.mrf.mxu0
    %185 = vdwg.mxu0
    %186 = vrot.lane.b32.xlu0 %v136, 96
    %v187 = vpop.permute.xlu0 %186
    %v189 = vsel %vm139, %v136, 0
    %v192 = vsel %vm139, %v187, 0
    %194 = vmatprep.subr.bf16.mxu0 0
    %195 = vmatpush1.bf16.xpose.msra.mxu0 0
    %196 = vmatprep.subr.bf16.mxu0 0
    %197 = vmatpush1.bf16.xpose.msra.mxu0 0
    %198 = vmatprep.subr.bf16.mxu0 0
    %199 = vmatpush1.bf16.xpose.msra.mxu0 0
    %200 = vmatprep.subr.bf16.mxu0 0
    %201 = vmatpush1.bf16.xpose.msra.mxu0 0
    %202 = vmatprep.subr.bf16.mxu0 0
    %203 = vmatpush1.bf16.xpose.msra.mxu0 0
    %204 = vmatprep.subr.bf16.mxu0 0
    %205 = vmatpush1.bf16.xpose.msra.mxu0 0
    %206 = vmatprep.subr.bf16.mxu0 0
    %207 = vmatpush1.bf16.xpose.msra.mxu0 0
    %208 = vmatprep.subr.bf16.mxu0 0
    %209 = vmatpush1.bf16.xpose.msra.mxu0 %v192
    %210 = vmatprep.subr.bf16.mxu0 0
    %211 = vmatpush2.bf16.xpose.msra.mxu0 0
    %212 = vmatprep.subr.bf16.mxu0 0
    %213 = vmatpush2.bf16.xpose.msra.mxu0 0
    %214 = vmatprep.subr.bf16.mxu0 0
    %215 = vmatpush2.bf16.xpose.msra.mxu0 0
    %216 = vmatprep.subr.bf16.mxu0 0
    %217 = vmatpush2.bf16.xpose.msra.mxu0 0
    %218 = vmatprep.subr.bf16.mxu0 0
    %219 = vmatpush2.bf16.xpose.msra.mxu0 0
    %220 = vmatprep.subr.bf16.mxu0 0
    %221 = vmatpush2.bf16.xpose.msra.mxu0 0
    %222 = vmatprep.subr.bf16.mxu0 0
    %223 = vmatpush2.bf16.xpose.msra.mxu0 0
    %224 = vmatprep.subr.bf16.mxu0 0
    %225 = vmatpush2.bf16.xpose.msra.mxu0 0
    %226 = vmatprep.mubr.bf16.mxu0 0
    %227 = vmatmul.mubr.bf16.gmra.mxu0 %v189
    %v228 = vpop.f32.mrf.mxu0
    %v229 = vadd.f32 0.0, %v228
    %v230 = vpop.f32.mrf.mxu0
    %v231 = vpop.f32.mrf.mxu0
    %v232 = vpop.f32.mrf.mxu0
    %233 = vdwg.mxu0
    %v234 = vsel %vm139, %v181, -inf
    %235 = vmax.xlane.f32.xlu0 %v234
    %v236 = vpop.xlane.xlu0 %235
    %v237 = vsel %vm139, %v229, -inf
    %238 = vmax.xlane.f32.xlu0 %v237
    %v239 = vpop.xlane.xlu0 %238
    %v240 = vsub.f32 %v181, %v236
    %v241 = vsub.f32 %v229, %v239
    %v242 = vmul.f32 %v240, 1.442695
    %v243 = vpow.pop %v242
    %v244 = vmul.f32 %v241, 1.442695
    %v245 = vpow.pop %v244
    %v246 = vsel %vm139, %v243, 0.0
    %247 = vadd.xlane.f32.xlu0 %v246
    %v248 = vpop.xlane.xlu0 %247
    %v249 = vsel %vm139, %v245, 0.0
    %250 = vadd.xlane.f32.xlu0 %v249
    %v251 = vpop.xlane.xlu0 %250
    %v252 = vrcp.pop %v248
    %v253 = vrcp.pop %v251
    %v254 = vmul.f32 %v243, %v252
    %v255 = vmul.f32 %v245, %v253
    %v256 = vpack.c.bf16 %v254, %v254
    %v257 = vpack.c.bf16 %v255, %v255
    %258 = vrot.lane.b32.xlu0 %v135, 64
    %v259 = vpop.permute.xlu0 %258
    %v261 = vsel %vm139, %v256, 0
    %vm263 = vcmask 1043456
    %v265 = vsel %vm263, %v259, 0
    %267 = vmatprep.subr.bf16.mxu0 0
    %268 = vmatpush1.bf16.msra.mxu0 0
    %269 = vmatprep.subr.bf16.mxu0 0
    %270 = vmatpush1.bf16.msra.mxu0 0
    %271 = vmatprep.subr.bf16.mxu0 0
    %272 = vmatpush1.bf16.msra.mxu0 0
    %273 = vmatprep.subr.bf16.mxu0 0
    %274 = vmatpush1.bf16.msra.mxu0 0
    %275 = vmatprep.subr.bf16.mxu0 0
    %276 = vmatpush1.bf16.msra.mxu0 0
    %277 = vmatprep.subr.bf16.mxu0 0
    %278 = vmatpush1.bf16.msra.mxu0 0
    %279 = vmatprep.subr.bf16.mxu0 0
    %280 = vmatpush1.bf16.msra.mxu0 0
    %281 = vmatprep.subr.bf16.mxu0 0
    %282 = vmatpush1.bf16.msra.mxu0 %v265
    %283 = vmatprep.subr.bf16.mxu0 0
    %284 = vmatpush2.bf16.msra.mxu0 0
    %285 = vmatprep.subr.bf16.mxu0 0
    %286 = vmatpush2.bf16.msra.mxu0 0
    %287 = vmatprep.subr.bf16.mxu0 0
    %288 = vmatpush2.bf16.msra.mxu0 0
    %289 = vmatprep.subr.bf16.mxu0 0
    %290 = vmatpush2.bf16.msra.mxu0 0
    %291 = vmatprep.subr.bf16.mxu0 0
    %292 = vmatpush2.bf16.msra.mxu0 0
    %293 = vmatprep.subr.bf16.mxu0 0
    %294 = vmatpush2.bf16.msra.mxu0 0
    %295 = vmatprep.subr.bf16.mxu0 0
    %296 = vmatpush2.bf16.msra.mxu0 0
    %297 = vmatprep.subr.bf16.mxu0 0
    %298 = vmatpush2.bf16.msra.mxu0 0
    %299 = vmatprep.mubr.bf16.mxu0 0
    %300 = vmatmul.mubr.bf16.gmra.mxu0 %v261
    %v301 = vpop.f32.mrf.mxu0
    %v302 = vadd.f32 0.0, %v301
    %v303 = vpop.f32.mrf.mxu0
    %v304 = vpop.f32.mrf.mxu0
    %v305 = vpop.f32.mrf.mxu0
    %306 = vdwg.mxu0
    %307 = vrot.lane.b32.xlu0 %v136, 64
    %v308 = vpop.permute.xlu0 %307
    %v310 = vsel %vm139, %v257, 0
    %v313 = vsel %vm263, %v308, 0
    %315 = vmatprep.subr.bf16.mxu0 0
    %316 = vmatpush1.bf16.msra.mxu0 0
    %317 = vmatprep.subr.bf16.mxu0 0
    %318 = vmatpush1.bf16.msra.mxu0 0
    %319 = vmatprep.subr.bf16.mxu0 0
    %320 = vmatpush1.bf16.msra.mxu0 0
    %321 = vmatprep.subr.bf16.mxu0 0
    %322 = vmatpush1.bf16.msra.mxu0 0
    %323 = vmatprep.subr.bf16.mxu0 0
    %324 = vmatpush1.bf16.msra.mxu0 0
    %325 = vmatprep.subr.bf16.mxu0 0
    %326 = vmatpush1.bf16.msra.mxu0 0
    %327 = vmatprep.subr.bf16.mxu0 0
    %328 = vmatpush1.bf16.msra.mxu0 0
    %329 = vmatprep.subr.bf16.mxu0 0
    %330 = vmatpush1.bf16.msra.mxu0 %v313
    %331 = vmatprep.subr.bf16.mxu0 0
    %332 = vmatpush2.bf16.msra.mxu0 0
    %333 = vmatprep.subr.bf16.mxu0 0
    %334 = vmatpush2.bf16.msra.mxu0 0
    %335 = vmatprep.subr.bf16.mxu0 0
    %336 = vmatpush2.bf16.msra.mxu0 0
    %337 = vmatprep.subr.bf16.mxu0 0
    %338 = vmatpush2.bf16.msra.mxu0 0
    %339 = vmatprep.subr.bf16.mxu0 0
    %340 = vmatpush2.bf16.msra.mxu0 0
    %341 = vmatprep.subr.bf16.mxu0 0
    %342 = vmatpush2.bf16.msra.mxu0 0
    %343 = vmatprep.subr.bf16.mxu0 0
    %344 = vmatpush2.bf16.msra.mxu0 0
    %345 = vmatprep.subr.bf16.mxu0 0
    %346 = vmatpush2.bf16.msra.mxu0 0
    %347 = vmatprep.mubr.bf16.mxu0 0
    %348 = vmatmul.mubr.bf16.gmra.mxu0 %v310
    %v349 = vpop.f32.mrf.mxu0
    %v350 = vadd.f32 0.0, %v349
    %v351 = vpop.f32.mrf.mxu0
    %v352 = vpop.f32.mrf.mxu0
    %v353 = vpop.f32.mrf.mxu0
    %354 = vdwg.mxu0
    %355 = vrot.lane.b32.xlu0 %v135, 120
    %v356 = vpop.permute.xlu0 %355
    %357 = vrot.lane.b32.xlu0 %v135, 88
    %v358 = vpop.permute.xlu0 %357
    %v360 = vsel %vm139, %v356, 0
    %v363 = vsel %vm139, %v358, 0
    %365 = vmatprep.subr.bf16.mxu0 0
    %366 = vmatpush1.bf16.xpose.msra.mxu0 0
    %367 = vmatprep.subr.bf16.mxu0 0
    %368 = vmatpush1.bf16.xpose.msra.mxu0 0
    %369 = vmatprep.subr.bf16.mxu0 0
    %370 = vmatpush1.bf16.xpose.msra.mxu0 0
    %371 = vmatprep.subr.bf16.mxu0 0
    %372 = vmatpush1.bf16.xpose.msra.mxu0 0
    %373 = vmatprep.subr.bf16.mxu0 0
    %374 = vmatpush1.bf16.xpose.msra.mxu0 0
    %375 = vmatprep.subr.bf16.mxu0 0
    %376 = vmatpush1.bf16.xpose.msra.mxu0 0
    %377 = vmatprep.subr.bf16.mxu0 0
    %378 = vmatpush1.bf16.xpose.msra.mxu0 0
    %379 = vmatprep.subr.bf16.mxu0 0
    %380 = vmatpush1.bf16.xpose.msra.mxu0 %v363
    %381 = vmatprep.subr.bf16.mxu0 0
    %382 = vmatpush2.bf16.xpose.msra.mxu0 0
    %383 = vmatprep.subr.bf16.mxu0 0
    %384 = vmatpush2.bf16.xpose.msra.mxu0 0
    %385 = vmatprep.subr.bf16.mxu0 0
    %386 = vmatpush2.bf16.xpose.msra.mxu0 0
    %387 = vmatprep.subr.bf16.mxu0 0
    %388 = vmatpush2.bf16.xpose.msra.mxu0 0
    %389 = vmatprep.subr.bf16.mxu0 0
    %390 = vmatpush2.bf16.xpose.msra.mxu0 0
    %391 = vmatprep.subr.bf16.mxu0 0
    %392 = vmatpush2.bf16.xpose.msra.mxu0 0
    %393 = vmatprep.subr.bf16.mxu0 0
    %394 = vmatpush2.bf16.xpose.msra.mxu0 0
    %395 = vmatprep.subr.bf16.mxu0 0
    %396 = vmatpush2.bf16.xpose.msra.mxu0 0
    %397 = vmatprep.mubr.bf16.mxu0 0
    %398 = vmatmul.mubr.bf16.gmra.mxu0 %v360
    %v399 = vpop.f32.mrf.mxu0
    %v400 = vadd.f32 0.0, %v399
    %v401 = vpop.f32.mrf.mxu0
    %v402 = vpop.f32.mrf.mxu0
    %v403 = vpop.f32.mrf.mxu0
    %404 = vdwg.mxu0
    %405 = vrot.lane.b32.xlu0 %v136, 120
    %v406 = vpop.permute.xlu0 %405
    %407 = vrot.lane.b32.xlu0 %v136, 88
    %v408 = vpop.permute.xlu0 %407
    %v410 = vsel %vm139, %v406, 0
    %v413 = vsel %vm139, %v408, 0
    %415 = vmatprep.subr.bf16.mxu0 0
    %416 = vmatpush1.bf16.xpose.msra.mxu0 0
    %417 = vmatprep.subr.bf16.mxu0 0
    %418 = vmatpush1.bf16.xpose.msra.mxu0 0
    %419 = vmatprep.subr.bf16.mxu0 0
    %420 = vmatpush1.bf16.xpose.msra.mxu0 0
    %421 = vmatprep.subr.bf16.mxu0 0
    %422 = vmatpush1.bf16.xpose.msra.mxu0 0
    %423 = vmatprep.subr.bf16.mxu0 0
    %424 = vmatpush1.bf16.xpose.msra.mxu0 0
    %425 = vmatprep.subr.bf16.mxu0 0
    %426 = vmatpush1.bf16.xpose.msra.mxu0 0
    %427 = vmatprep.subr.bf16.mxu0 0
    %428 = vmatpush1.bf16.xpose.msra.mxu0 0
    %429 = vmatprep.subr.bf16.mxu0 0
    %430 = vmatpush1.bf16.xpose.msra.mxu0 %v413
    %431 = vmatprep.subr.bf16.mxu0 0
    %432 = vmatpush2.bf16.xpose.msra.mxu0 0
    %433 = vmatprep.subr.bf16.mxu0 0
    %434 = vmatpush2.bf16.xpose.msra.mxu0 0
    %435 = vmatprep.subr.bf16.mxu0 0
    %436 = vmatpush2.bf16.xpose.msra.mxu0 0
    %437 = vmatprep.subr.bf16.mxu0 0
    %438 = vmatpush2.bf16.xpose.msra.mxu0 0
    %439 = vmatprep.subr.bf16.mxu0 0
    %440 = vmatpush2.bf16.xpose.msra.mxu0 0
    %441 = vmatprep.subr.bf16.mxu0 0
    %442 = vmatpush2.bf16.xpose.msra.mxu0 0
    %443 = vmatprep.subr.bf16.mxu0 0
    %444 = vmatpush2.bf16.xpose.msra.mxu0 0
    %445 = vmatprep.subr.bf16.mxu0 0
    %446 = vmatpush2.bf16.xpose.msra.mxu0 0
    %447 = vmatprep.mubr.bf16.mxu0 0
    %448 = vmatmul.mubr.bf16.gmra.mxu0 %v410
    %v449 = vpop.f32.mrf.mxu0
    %v450 = vadd.f32 0.0, %v449
    %v451 = vpop.f32.mrf.mxu0
    %v452 = vpop.f32.mrf.mxu0
    %v453 = vpop.f32.mrf.mxu0
    %454 = vdwg.mxu0
    %v455 = vsel %vm139, %v400, -inf
    %456 = vmax.xlane.f32.xlu0 %v455
    %v457 = vpop.xlane.xlu0 %456
    %v458 = vsel %vm139, %v450, -inf
    %459 = vmax.xlane.f32.xlu0 %v458
    %v460 = vpop.xlane.xlu0 %459
    %v461 = vsub.f32 %v400, %v457
    %v462 = vsub.f32 %v450, %v460
    %v463 = vmul.f32 %v461, 1.442695
    %v464 = vpow.pop %v463
    %v465 = vmul.f32 %v462, 1.442695
    %v466 = vpow.pop %v465
    %v467 = vsel %vm139, %v464, 0.0
    %468 = vadd.xlane.f32.xlu0 %v467
    %v469 = vpop.xlane.xlu0 %468
    %v470 = vsel %vm139, %v466, 0.0
    %471 = vadd.xlane.f32.xlu0 %v470
    %v472 = vpop.xlane.xlu0 %471
    %v473 = vrcp.pop %v469
    %v474 = vrcp.pop %v472
    %v475 = vmul.f32 %v464, %v473
    %v476 = vmul.f32 %v466, %v474
    %v477 = vpack.c.bf16 %v475, %v475
    %v478 = vpack.c.bf16 %v476, %v476
    %479 = vrot.lane.b32.xlu0 %v135, 56
    %v480 = vpop.permute.xlu0 %479
    %v482 = vsel %vm139, %v477, 0
    %v485 = vsel %vm263, %v480, 0
    %487 = vmatprep.subr.bf16.mxu0 0
    %488 = vmatpush1.bf16.msra.mxu0 0
    %489 = vmatprep.subr.bf16.mxu0 0
    %490 = vmatpush1.bf16.msra.mxu0 0
    %491 = vmatprep.subr.bf16.mxu0 0
    %492 = vmatpush1.bf16.msra.mxu0 0
    %493 = vmatprep.subr.bf16.mxu0 0
    %494 = vmatpush1.bf16.msra.mxu0 0
    %495 = vmatprep.subr.bf16.mxu0 0
    %496 = vmatpush1.bf16.msra.mxu0 0
    %497 = vmatprep.subr.bf16.mxu0 0
    %498 = vmatpush1.bf16.msra.mxu0 0
    %499 = vmatprep.subr.bf16.mxu0 0
    %500 = vmatpush1.bf16.msra.mxu0 0
    %501 = vmatprep.subr.bf16.mxu0 0
    %502 = vmatpush1.bf16.msra.mxu0 %v485
    %503 = vmatprep.subr.bf16.mxu0 0
    %504 = vmatpush2.bf16.msra.mxu0 0
    %505 = vmatprep.subr.bf16.mxu0 0
    %506 = vmatpush2.bf16.msra.mxu0 0
    %507 = vmatprep.subr.bf16.mxu0 0
    %508 = vmatpush2.bf16.msra.mxu0 0
    %509 = vmatprep.subr.bf16.mxu0 0
    %510 = vmatpush2.bf16.msra.mxu0 0
    %511 = vmatprep.subr.bf16.mxu0 0
    %512 = vmatpush2.bf16.msra.mxu0 0
    %513 = vmatprep.subr.bf16.mxu0 0
    %514 = vmatpush2.bf16.msra.mxu0 0
    %515 = vmatprep.subr.bf16.mxu0 0
    %516 = vmatpush2.bf16.msra.mxu0 0
    %517 = vmatprep.subr.bf16.mxu0 0
    %518 = vmatpush2.bf16.msra.mxu0 0
    %519 = vmatprep.mubr.bf16.mxu0 0
    %520 = vmatmul.mubr.bf16.gmra.mxu0 %v482
    %v521 = vpop.f32.mrf.mxu0
    %v522 = vadd.f32 0.0, %v521
    %v523 = vpop.f32.mrf.mxu0
    %v524 = vpop.f32.mrf.mxu0
    %v525 = vpop.f32.mrf.mxu0
    %526 = vdwg.mxu0
    %527 = vrot.lane.b32.xlu0 %v136, 56
    %v528 = vpop.permute.xlu0 %527
    %v530 = vsel %vm139, %v478, 0
    %v533 = vsel %vm263, %v528, 0
    %535 = vmatprep.subr.bf16.mxu0 0
    %536 = vmatpush1.bf16.msra.mxu0 0
    %537 = vmatprep.subr.bf16.mxu0 0
    %538 = vmatpush1.bf16.msra.mxu0 0
    %539 = vmatprep.subr.bf16.mxu0 0
    %540 = vmatpush1.bf16.msra.mxu0 0
    %541 = vmatprep.subr.bf16.mxu0 0
    %542 = vmatpush1.bf16.msra.mxu0 0
    %543 = vmatprep.subr.bf16.mxu0 0
    %544 = vmatpush1.bf16.msra.mxu0 0
    %545 = vmatprep.subr.bf16.mxu0 0
    %546 = vmatpush1.bf16.msra.mxu0 0
    %547 = vmatprep.subr.bf16.mxu0 0
    %548 = vmatpush1.bf16.msra.mxu0 0
    %549 = vmatprep.subr.bf16.mxu0 0
    %550 = vmatpush1.bf16.msra.mxu0 %v533
    %551 = vmatprep.subr.bf16.mxu0 0
    %552 = vmatpush2.bf16.msra.mxu0 0
    %553 = vmatprep.subr.bf16.mxu0 0
    %554 = vmatpush2.bf16.msra.mxu0 0
    %555 = vmatprep.subr.bf16.mxu0 0
    %556 = vmatpush2.bf16.msra.mxu0 0
    %557 = vmatprep.subr.bf16.mxu0 0
    %558 = vmatpush2.bf16.msra.mxu0 0
    %559 = vmatprep.subr.bf16.mxu0 0
    %560 = vmatpush2.bf16.msra.mxu0 0
    %561 = vmatprep.subr.bf16.mxu0 0
    %562 = vmatpush2.bf16.msra.mxu0 0
    %563 = vmatprep.subr.bf16.mxu0 0
    %564 = vmatpush2.bf16.msra.mxu0 0
    %565 = vmatprep.subr.bf16.mxu0 0
    %566 = vmatpush2.bf16.msra.mxu0 0
    %567 = vmatprep.mubr.bf16.mxu0 0
    %568 = vmatmul.mubr.bf16.gmra.mxu0 %v530
    %v569 = vpop.f32.mrf.mxu0
    %v570 = vadd.f32 0.0, %v569
    %v571 = vpop.f32.mrf.mxu0
    %v572 = vpop.f32.mrf.mxu0
    %v573 = vpop.f32.mrf.mxu0
    %574 = vdwg.mxu0
    %575 = vrot.lane.b32.xlu0 %v135, 112
    %v576 = vpop.permute.xlu0 %575
    %577 = vrot.lane.b32.xlu0 %v135, 80
    %v578 = vpop.permute.xlu0 %577
    %v580 = vsel %vm139, %v576, 0
    %v583 = vsel %vm139, %v578, 0
    %585 = vmatprep.subr.bf16.mxu0 0
    %586 = vmatpush1.bf16.xpose.msra.mxu0 0
    %587 = vmatprep.subr.bf16.mxu0 0
    %588 = vmatpush1.bf16.xpose.msra.mxu0 0
    %589 = vmatprep.subr.bf16.mxu0 0
    %590 = vmatpush1.bf16.xpose.msra.mxu0 0
    %591 = vmatprep.subr.bf16.mxu0 0
    %592 = vmatpush1.bf16.xpose.msra.mxu0 0
    %593 = vmatprep.subr.bf16.mxu0 0
    %594 = vmatpush1.bf16.xpose.msra.mxu0 0
    %595 = vmatprep.subr.bf16.mxu0 0
    %596 = vmatpush1.bf16.xpose.msra.mxu0 0
    %597 = vmatprep.subr.bf16.mxu0 0
    %598 = vmatpush1.bf16.xpose.msra.mxu0 0
    %599 = vmatprep.subr.bf16.mxu0 0
    %600 = vmatpush1.bf16.xpose.msra.mxu0 %v583
    %601 = vmatprep.subr.bf16.mxu0 0
    %602 = vmatpush2.bf16.xpose.msra.mxu0 0
    %603 = vmatprep.subr.bf16.mxu0 0
    %604 = vmatpush2.bf16.xpose.msra.mxu0 0
    %605 = vmatprep.subr.bf16.mxu0 0
    %606 = vmatpush2.bf16.xpose.msra.mxu0 0
    %607 = vmatprep.subr.bf16.mxu0 0
    %608 = vmatpush2.bf16.xpose.msra.mxu0 0
    %609 = vmatprep.subr.bf16.mxu0 0
    %610 = vmatpush2.bf16.xpose.msra.mxu0 0
    %611 = vmatprep.subr.bf16.mxu0 0
    %612 = vmatpush2.bf16.xpose.msra.mxu0 0
    %613 = vmatprep.subr.bf16.mxu0 0
    %614 = vmatpush2.bf16.xpose.msra.mxu0 0
    %615 = vmatprep.subr.bf16.mxu0 0
    %616 = vmatpush2.bf16.xpose.msra.mxu0 0
    %617 = vmatprep.mubr.bf16.mxu0 0
    %618 = vmatmul.mubr.bf16.gmra.mxu0 %v580
    %v619 = vpop.f32.mrf.mxu0
    %v620 = vadd.f32 0.0, %v619
    %v621 = vpop.f32.mrf.mxu0
    %v622 = vpop.f32.mrf.mxu0
    %v623 = vpop.f32.mrf.mxu0
    %624 = vdwg.mxu0
    %625 = vrot.lane.b32.xlu0 %v136, 112
    %v626 = vpop.permute.xlu0 %625
    %627 = vrot.lane.b32.xlu0 %v136, 80
    %v628 = vpop.permute.xlu0 %627
    %v630 = vsel %vm139, %v626, 0
    %v633 = vsel %vm139, %v628, 0
    %635 = vmatprep.subr.bf16.mxu0 0
    %636 = vmatpush1.bf16.xpose.msra.mxu0 0
    %637 = vmatprep.subr.bf16.mxu0 0
    %638 = vmatpush1.bf16.xpose.msra.mxu0 0
    %639 = vmatprep.subr.bf16.mxu0 0
    %640 = vmatpush1.bf16.xpose.msra.mxu0 0
    %641 = vmatprep.subr.bf16.mxu0 0
    %642 = vmatpush1.bf16.xpose.msra.mxu0 0
    %643 = vmatprep.subr.bf16.mxu0 0
    %644 = vmatpush1.bf16.xpose.msra.mxu0 0
    %645 = vmatprep.subr.bf16.mxu0 0
    %646 = vmatpush1.bf16.xpose.msra.mxu0 0
    %647 = vmatprep.subr.bf16.mxu0 0
    %648 = vmatpush1.bf16.xpose.msra.mxu0 0
    %649 = vmatprep.subr.bf16.mxu0 0
    %650 = vmatpush1.bf16.xpose.msra.mxu0 %v633
    %651 = vmatprep.subr.bf16.mxu0 0
    %652 = vmatpush2.bf16.xpose.msra.mxu0 0
    %653 = vmatprep.subr.bf16.mxu0 0
    %654 = vmatpush2.bf16.xpose.msra.mxu0 0
    %655 = vmatprep.subr.bf16.mxu0 0
    %656 = vmatpush2.bf16.xpose.msra.mxu0 0
    %657 = vmatprep.subr.bf16.mxu0 0
    %658 = vmatpush2.bf16.xpose.msra.mxu0 0
    %659 = vmatprep.subr.bf16.mxu0 0
    %660 = vmatpush2.bf16.xpose.msra.mxu0 0
    %661 = vmatprep.subr.bf16.mxu0 0
    %662 = vmatpush2.bf16.xpose.msra.mxu0 0
    %663 = vmatprep.subr.bf16.mxu0 0
    %664 = vmatpush2.bf16.xpose.msra.mxu0 0
    %665 = vmatprep.subr.bf16.mxu0 0
    %666 = vmatpush2.bf16.xpose.msra.mxu0 0
    %667 = vmatprep.mubr.bf16.mxu0 0
    %668 = vmatmul.mubr.bf16.gmra.mxu0 %v630
    %v669 = vpop.f32.mrf.mxu0
    %v670 = vadd.f32 0.0, %v669
    %v671 = vpop.f32.mrf.mxu0
    %v672 = vpop.f32.mrf.mxu0
    %v673 = vpop.f32.mrf.mxu0
    %674 = vdwg.mxu0
    %v675 = vsel %vm139, %v620, -inf
    %676 = vmax.xlane.f32.xlu0 %v675
    %v677 = vpop.xlane.xlu0 %676
    %v678 = vsel %vm139, %v670, -inf
    %679 = vmax.xlane.f32.xlu0 %v678
    %v680 = vpop.xlane.xlu0 %679
    %v681 = vsub.f32 %v620, %v677
    %v682 = vsub.f32 %v670, %v680
    %v683 = vmul.f32 %v681, 1.442695
    %v684 = vpow.pop %v683
    %v685 = vmul.f32 %v682, 1.442695
    %v686 = vpow.pop %v685
    %v687 = vsel %vm139, %v684, 0.0
    %688 = vadd.xlane.f32.xlu0 %v687
    %v689 = vpop.xlane.xlu0 %688
    %v690 = vsel %vm139, %v686, 0.0
    %691 = vadd.xlane.f32.xlu0 %v690
    %v692 = vpop.xlane.xlu0 %691
    %v693 = vrcp.pop %v689
    %v694 = vrcp.pop %v692
    %v695 = vmul.f32 %v684, %v693
    %v696 = vmul.f32 %v686, %v694
    %v697 = vpack.c.bf16 %v695, %v695
    %v698 = vpack.c.bf16 %v696, %v696
    %699 = vrot.lane.b32.xlu0 %v135, 48
    %v700 = vpop.permute.xlu0 %699
    %v702 = vsel %vm139, %v697, 0
    %v705 = vsel %vm263, %v700, 0
    %707 = vmatprep.subr.bf16.mxu0 0
    %708 = vmatpush1.bf16.msra.mxu0 0
    %709 = vmatprep.subr.bf16.mxu0 0
    %710 = vmatpush1.bf16.msra.mxu0 0
    %711 = vmatprep.subr.bf16.mxu0 0
    %712 = vmatpush1.bf16.msra.mxu0 0
    %713 = vmatprep.subr.bf16.mxu0 0
    %714 = vmatpush1.bf16.msra.mxu0 0
    %715 = vmatprep.subr.bf16.mxu0 0
    %716 = vmatpush1.bf16.msra.mxu0 0
    %717 = vmatprep.subr.bf16.mxu0 0
    %718 = vmatpush1.bf16.msra.mxu0 0
    %719 = vmatprep.subr.bf16.mxu0 0
    %720 = vmatpush1.bf16.msra.mxu0 0
    %721 = vmatprep.subr.bf16.mxu0 0
    %722 = vmatpush1.bf16.msra.mxu0 %v705
    %723 = vmatprep.subr.bf16.mxu0 0
    %724 = vmatpush2.bf16.msra.mxu0 0
    %725 = vmatprep.subr.bf16.mxu0 0
    %726 = vmatpush2.bf16.msra.mxu0 0
    %727 = vmatprep.subr.bf16.mxu0 0
    %728 = vmatpush2.bf16.msra.mxu0 0
    %729 = vmatprep.subr.bf16.mxu0 0
    %730 = vmatpush2.bf16.msra.mxu0 0
    %731 = vmatprep.subr.bf16.mxu0 0
    %732 = vmatpush2.bf16.msra.mxu0 0
    %733 = vmatprep.subr.bf16.mxu0 0
    %734 = vmatpush2.bf16.msra.mxu0 0
    %735 = vmatprep.subr.bf16.mxu0 0
    %736 = vmatpush2.bf16.msra.mxu0 0
    %737 = vmatprep.subr.bf16.mxu0 0
    %738 = vmatpush2.bf16.msra.mxu0 0
    %739 = vmatprep.mubr.bf16.mxu0 0
    %740 = vmatmul.mubr.bf16.gmra.mxu0 %v702
    %v741 = vpop.f32.mrf.mxu0
    %v742 = vadd.f32 0.0, %v741
    %v743 = vpop.f32.mrf.mxu0
    %v744 = vpop.f32.mrf.mxu0
    %v745 = vpop.f32.mrf.mxu0
    %746 = vdwg.mxu0
    %747 = vrot.lane.b32.xlu0 %v136, 48
    %v748 = vpop.permute.xlu0 %747
    %v750 = vsel %vm139, %v698, 0
    %v753 = vsel %vm263, %v748, 0
    %755 = vmatprep.subr.bf16.mxu0 0
    %756 = vmatpush1.bf16.msra.mxu0 0
    %757 = vmatprep.subr.bf16.mxu0 0
    %758 = vmatpush1.bf16.msra.mxu0 0
    %759 = vmatprep.subr.bf16.mxu0 0
    %760 = vmatpush1.bf16.msra.mxu0 0
    %761 = vmatprep.subr.bf16.mxu0 0
    %762 = vmatpush1.bf16.msra.mxu0 0
    %763 = vmatprep.subr.bf16.mxu0 0
    %764 = vmatpush1.bf16.msra.mxu0 0
    %765 = vmatprep.subr.bf16.mxu0 0
    %766 = vmatpush1.bf16.msra.mxu0 0
    %767 = vmatprep.subr.bf16.mxu0 0
    %768 = vmatpush1.bf16.msra.mxu0 0
    %769 = vmatprep.subr.bf16.mxu0 0
    %770 = vmatpush1.bf16.msra.mxu0 %v753
    %771 = vmatprep.subr.bf16.mxu0 0
    %772 = vmatpush2.bf16.msra.mxu0 0
    %773 = vmatprep.subr.bf16.mxu0 0
    %774 = vmatpush2.bf16.msra.mxu0 0
    %775 = vmatprep.subr.bf16.mxu0 0
    %776 = vmatpush2.bf16.msra.mxu0 0
    %777 = vmatprep.subr.bf16.mxu0 0
    %778 = vmatpush2.bf16.msra.mxu0 0
    %779 = vmatprep.subr.bf16.mxu0 0
    %780 = vmatpush2.bf16.msra.mxu0 0
    %781 = vmatprep.subr.bf16.mxu0 0
    %782 = vmatpush2.bf16.msra.mxu0 0
    %783 = vmatprep.subr.bf16.mxu0 0
    %784 = vmatpush2.bf16.msra.mxu0 0
    %785 = vmatprep.subr.bf16.mxu0 0
    %786 = vmatpush2.bf16.msra.mxu0 0
    %787 = vmatprep.mubr.bf16.mxu0 0
    %788 = vmatmul.mubr.bf16.gmra.mxu0 %v750
    %v789 = vpop.f32.mrf.mxu0
    %v790 = vadd.f32 0.0, %v789
    %v791 = vpop.f32.mrf.mxu0
    %v792 = vpop.f32.mrf.mxu0
    %v793 = vpop.f32.mrf.mxu0
    %794 = vdwg.mxu0
    %795 = vrot.lane.b32.xlu0 %v135, 104
    %v796 = vpop.permute.xlu0 %795
    %797 = vrot.lane.b32.xlu0 %v135, 72
    %v798 = vpop.permute.xlu0 %797
    %v800 = vsel %vm139, %v796, 0
    %v803 = vsel %vm139, %v798, 0
    %805 = vmatprep.subr.bf16.mxu0 0
    %806 = vmatpush1.bf16.xpose.msra.mxu0 0
    %807 = vmatprep.subr.bf16.mxu0 0
    %808 = vmatpush1.bf16.xpose.msra.mxu0 0
    %809 = vmatprep.subr.bf16.mxu0 0
    %810 = vmatpush1.bf16.xpose.msra.mxu0 0
    %811 = vmatprep.subr.bf16.mxu0 0
    %812 = vmatpush1.bf16.xpose.msra.mxu0 0
    %813 = vmatprep.subr.bf16.mxu0 0
    %814 = vmatpush1.bf16.xpose.msra.mxu0 0
    %815 = vmatprep.subr.bf16.mxu0 0
    %816 = vmatpush1.bf16.xpose.msra.mxu0 0
    %817 = vmatprep.subr.bf16.mxu0 0
    %818 = vmatpush1.bf16.xpose.msra.mxu0 0
    %819 = vmatprep.subr.bf16.mxu0 0
    %820 = vmatpush1.bf16.xpose.msra.mxu0 %v803
    %821 = vmatprep.subr.bf16.mxu0 0
    %822 = vmatpush2.bf16.xpose.msra.mxu0 0
    %823 = vmatprep.subr.bf16.mxu0 0
    %824 = vmatpush2.bf16.xpose.msra.mxu0 0
    %825 = vmatprep.subr.bf16.mxu0 0
    %826 = vmatpush2.bf16.xpose.msra.mxu0 0
    %827 = vmatprep.subr.bf16.mxu0 0
    %828 = vmatpush2.bf16.xpose.msra.mxu0 0
    %829 = vmatprep.subr.bf16.mxu0 0
    %830 = vmatpush2.bf16.xpose.msra.mxu0 0
    %831 = vmatprep.subr.bf16.mxu0 0
    %832 = vmatpush2.bf16.xpose.msra.mxu0 0
    %833 = vmatprep.subr.bf16.mxu0 0
    %834 = vmatpush2.bf16.xpose.msra.mxu0 0
    %835 = vmatprep.subr.bf16.mxu0 0
    %836 = vmatpush2.bf16.xpose.msra.mxu0 0
    %837 = vmatprep.mubr.bf16.mxu0 0
    %838 = vmatmul.mubr.bf16.gmra.mxu0 %v800
    %v839 = vpop.f32.mrf.mxu0
    %v840 = vadd.f32 0.0, %v839
    %v841 = vpop.f32.mrf.mxu0
    %v842 = vpop.f32.mrf.mxu0
    %v843 = vpop.f32.mrf.mxu0
    %844 = vdwg.mxu0
    %845 = vrot.lane.b32.xlu0 %v136, 104
    %v846 = vpop.permute.xlu0 %845
    %847 = vrot.lane.b32.xlu0 %v136, 72
    %v848 = vpop.permute.xlu0 %847
    %v850 = vsel %vm139, %v846, 0
    %v853 = vsel %vm139, %v848, 0
    %855 = vmatprep.subr.bf16.mxu0 0
    %856 = vmatpush1.bf16.xpose.msra.mxu0 0
    %857 = vmatprep.subr.bf16.mxu0 0
    %858 = vmatpush1.bf16.xpose.msra.mxu0 0
    %859 = vmatprep.subr.bf16.mxu0 0
    %860 = vmatpush1.bf16.xpose.msra.mxu0 0
    %861 = vmatprep.subr.bf16.mxu0 0
    %862 = vmatpush1.bf16.xpose.msra.mxu0 0
    %863 = vmatprep.subr.bf16.mxu0 0
    %864 = vmatpush1.bf16.xpose.msra.mxu0 0
    %865 = vmatprep.subr.bf16.mxu0 0
    %866 = vmatpush1.bf16.xpose.msra.mxu0 0
    %867 = vmatprep.subr.bf16.mxu0 0
    %868 = vmatpush1.bf16.xpose.msra.mxu0 0
    %869 = vmatprep.subr.bf16.mxu0 0
    %870 = vmatpush1.bf16.xpose.msra.mxu0 %v853
    %871 = vmatprep.subr.bf16.mxu0 0
    %872 = vmatpush2.bf16.xpose.msra.mxu0 0
    %873 = vmatprep.subr.bf16.mxu0 0
    %874 = vmatpush2.bf16.xpose.msra.mxu0 0
    %875 = vmatprep.subr.bf16.mxu0 0
    %876 = vmatpush2.bf16.xpose.msra.mxu0 0
    %877 = vmatprep.subr.bf16.mxu0 0
    %878 = vmatpush2.bf16.xpose.msra.mxu0 0
    %879 = vmatprep.subr.bf16.mxu0 0
    %880 = vmatpush2.bf16.xpose.msra.mxu0 0
    %881 = vmatprep.subr.bf16.mxu0 0
    %882 = vmatpush2.bf16.xpose.msra.mxu0 0
    %883 = vmatprep.subr.bf16.mxu0 0
    %884 = vmatpush2.bf16.xpose.msra.mxu0 0
    %885 = vmatprep.subr.bf16.mxu0 0
    %886 = vmatpush2.bf16.xpose.msra.mxu0 0
    %887 = vmatprep.mubr.bf16.mxu0 0
    %888 = vmatmul.mubr.bf16.gmra.mxu0 %v850
    %v889 = vpop.f32.mrf.mxu0
    %v890 = vadd.f32 0.0, %v889
    %v891 = vpop.f32.mrf.mxu0
    %v892 = vpop.f32.mrf.mxu0
    %v893 = vpop.f32.mrf.mxu0
    %894 = vdwg.mxu0
    %v895 = vsel %vm139, %v840, -inf
    %896 = vmax.xlane.f32.xlu0 %v895
    %v897 = vpop.xlane.xlu0 %896
    %v898 = vsel %vm139, %v890, -inf
    %899 = vmax.xlane.f32.xlu0 %v898
    %v900 = vpop.xlane.xlu0 %899
    %v901 = vsub.f32 %v840, %v897
    %v902 = vsub.f32 %v890, %v900
    %v903 = vmul.f32 %v901, 1.442695
    %v904 = vpow.pop %v903
    %v905 = vmul.f32 %v902, 1.442695
    %v906 = vpow.pop %v905
    %v907 = vsel %vm139, %v904, 0.0
    %908 = vadd.xlane.f32.xlu0 %v907
    %v909 = vpop.xlane.xlu0 %908
    %v910 = vsel %vm139, %v906, 0.0
    %911 = vadd.xlane.f32.xlu0 %v910
    %v912 = vpop.xlane.xlu0 %911
    %v913 = vrcp.pop %v909
    %v914 = vrcp.pop %v912
    %v915 = vmul.f32 %v904, %v913
    %v916 = vmul.f32 %v906, %v914
    %v917 = vpack.c.bf16 %v915, %v915
    %v918 = vpack.c.bf16 %v916, %v916
    %919 = vrot.lane.b32.xlu0 %v135, 40
    %v920 = vpop.permute.xlu0 %919
    %v922 = vsel %vm139, %v917, 0
    %v925 = vsel %vm263, %v920, 0
    %927 = vmatprep.subr.bf16.mxu0 0
    %928 = vmatpush1.bf16.msra.mxu0 0
    %929 = vmatprep.subr.bf16.mxu0 0
    %930 = vmatpush1.bf16.msra.mxu0 0
    %931 = vmatprep.subr.bf16.mxu0 0
    %932 = vmatpush1.bf16.msra.mxu0 0
    %933 = vmatprep.subr.bf16.mxu0 0
    %934 = vmatpush1.bf16.msra.mxu0 0
    %935 = vmatprep.subr.bf16.mxu0 0
    %936 = vmatpush1.bf16.msra.mxu0 0
    %937 = vmatprep.subr.bf16.mxu0 0
    %938 = vmatpush1.bf16.msra.mxu0 0
    %939 = vmatprep.subr.bf16.mxu0 0
    %940 = vmatpush1.bf16.msra.mxu0 0
    %941 = vmatprep.subr.bf16.mxu0 0
    %942 = vmatpush1.bf16.msra.mxu0 %v925
    %943 = vmatprep.subr.bf16.mxu0 0
    %944 = vmatpush2.bf16.msra.mxu0 0
    %945 = vmatprep.subr.bf16.mxu0 0
    %946 = vmatpush2.bf16.msra.mxu0 0
    %947 = vmatprep.subr.bf16.mxu0 0
    %948 = vmatpush2.bf16.msra.mxu0 0
    %949 = vmatprep.subr.bf16.mxu0 0
    %950 = vmatpush2.bf16.msra.mxu0 0
    %951 = vmatprep.subr.bf16.mxu0 0
    %952 = vmatpush2.bf16.msra.mxu0 0
    %953 = vmatprep.subr.bf16.mxu0 0
    %954 = vmatpush2.bf16.msra.mxu0 0
    %955 = vmatprep.subr.bf16.mxu0 0
    %956 = vmatpush2.bf16.msra.mxu0 0
    %957 = vmatprep.subr.bf16.mxu0 0
    %958 = vmatpush2.bf16.msra.mxu0 0
    %959 = vmatprep.mubr.bf16.mxu0 0
    %960 = vmatmul.mubr.bf16.gmra.mxu0 %v922
    %v961 = vpop.f32.mrf.mxu0
    %v962 = vadd.f32 0.0, %v961
    %v963 = vpop.f32.mrf.mxu0
    %v964 = vpop.f32.mrf.mxu0
    %v965 = vpop.f32.mrf.mxu0
    %966 = vdwg.mxu0
    %967 = vrot.lane.b32.xlu0 %v136, 40
    %v968 = vpop.permute.xlu0 %967
    %v970 = vsel %vm139, %v918, 0
    %v973 = vsel %vm263, %v968, 0
    %975 = vmatprep.subr.bf16.mxu0 0
    %976 = vmatpush1.bf16.msra.mxu0 0
    %977 = vmatprep.subr.bf16.mxu0 0
    %978 = vmatpush1.bf16.msra.mxu0 0
    %979 = vmatprep.subr.bf16.mxu0 0
    %980 = vmatpush1.bf16.msra.mxu0 0
    %981 = vmatprep.subr.bf16.mxu0 0
    %982 = vmatpush1.bf16.msra.mxu0 0
    %983 = vmatprep.subr.bf16.mxu0 0
    %984 = vmatpush1.bf16.msra.mxu0 0
    %985 = vmatprep.subr.bf16.mxu0 0
    %986 = vmatpush1.bf16.msra.mxu0 0
    %987 = vmatprep.subr.bf16.mxu0 0
    %988 = vmatpush1.bf16.msra.mxu0 0
    %989 = vmatprep.subr.bf16.mxu0 0
    %990 = vmatpush1.bf16.msra.mxu0 %v973
    %991 = vmatprep.subr.bf16.mxu0 0
    %992 = vmatpush2.bf16.msra.mxu0 0
    %993 = vmatprep.subr.bf16.mxu0 0
    %994 = vmatpush2.bf16.msra.mxu0 0
    %995 = vmatprep.subr.bf16.mxu0 0
    %996 = vmatpush2.bf16.msra.mxu0 0
    %997 = vmatprep.subr.bf16.mxu0 0
    %998 = vmatpush2.bf16.msra.mxu0 0
    %999 = vmatprep.subr.bf16.mxu0 0
    %1000 = vmatpush2.bf16.msra.mxu0 0
    %1001 = vmatprep.subr.bf16.mxu0 0
    %1002 = vmatpush2.bf16.msra.mxu0 0
    %1003 = vmatprep.subr.bf16.mxu0 0
    %1004 = vmatpush2.bf16.msra.mxu0 0
    %1005 = vmatprep.subr.bf16.mxu0 0
    %1006 = vmatpush2.bf16.msra.mxu0 0
    %1007 = vmatprep.mubr.bf16.mxu0 0
    %1008 = vmatmul.mubr.bf16.gmra.mxu0 %v970
    %v1009 = vpop.f32.mrf.mxu0
    %v1010 = vadd.f32 0.0, %v1009
    %v1011 = vpop.f32.mrf.mxu0
    %v1012 = vpop.f32.mrf.mxu0
    %v1013 = vpop.f32.mrf.mxu0
    %1014 = vdwg.mxu0
    %1017 = vrot.lane.b32.xlu0 %v522, 8
    %v1018 = vpop.permute.xlu0 %1017
    %1019 = vrot.lane.b32.xlu0 %v570, 8
    %v1020 = vpop.permute.xlu0 %1019
    %1025 = vrot.lane.b32.xlu0 %v742, 16
    %v1026 = vpop.permute.xlu0 %1025
    %1027 = vrot.lane.b32.xlu0 %v790, 16
    %v1028 = vpop.permute.xlu0 %1027
    %1033 = vrot.lane.b32.xlu0 %v962, 24
    %v1034 = vpop.permute.xlu0 %1033
    %1035 = vrot.lane.b32.xlu0 %v1010, 24
    %v1036 = vpop.permute.xlu0 %1035
    %v1039 = vsel %vm139, %v302, %v1018
    %v1040 = vsel %vm139, %v350, %v1020
    %vm1041 = vcmask 130048
    %v1042 = vsel %vm1041, %v1039, %v1026
    %v1043 = vsel %vm1041, %v1040, %v1028
    %vm1044 = vcmask 195584
    %v1045 = vsel %vm1044, %v1042, %v1034
    %v1046 = vsel %vm1044, %v1043, %v1036
    %v1047 = vpack.c.bf16 %v1045, %v1045
    %v1048 = vpack.c.bf16 %v1046, %v1046
    %v1051 = vunpack.c.l.b16 %v1047
    %v1052 = vunpack.c.l.b16 %v1048
    %v1053 = vpack.c.b16 %v1052, %v1051
    %v1058 = vunpack.c.l.b16 %v61
    %v1059 = vunpack.c.l.b16 %v62
    %v1060 = vunpack.c.l.b16 %v63
    %v1061 = vunpack.c.l.b16 %v64
    %v1062 = vpack.c.b16 %v1059, %v1058
    %v1063 = vpack.c.b16 %v1061, %v1060
    %v1067 = vsel %vm86, %v1053, 0
    %1069 = vmatprep.subr.bf16.mxu0 0
    %1070 = vmatpush1.bf16.msra.mxu0 0
    %1071 = vmatprep.subr.bf16.mxu0 0
    %1072 = vmatpush1.bf16.msra.mxu0 0
    %1073 = vmatprep.subr.bf16.mxu0 0
    %1074 = vmatpush1.bf16.msra.mxu0 0
    %1075 = vmatprep.subr.bf16.mxu0 0
    %1076 = vmatpush1.bf16.msra.mxu0 0
    %1077 = vmatprep.subr.bf16.mxu0 0
    %1078 = vmatpush1.bf16.msra.mxu0 0
    %1079 = vmatprep.subr.bf16.mxu0 0
    %1080 = vmatpush1.bf16.msra.mxu0 0
    %1081 = vmatprep.subr.bf16.mxu0 0
    %1082 = vmatpush1.bf16.msra.mxu0 %v1063
    %1083 = vmatprep.subr.bf16.mxu0 0
    %1084 = vmatpush1.bf16.msra.mxu0 %v1062
    %1085 = vmatprep.subr.bf16.mxu0 0
    %1086 = vmatpush2.bf16.msra.mxu0 0
    %1087 = vmatprep.subr.bf16.mxu0 0
    %1088 = vmatpush2.bf16.msra.mxu0 0
    %1089 = vmatprep.subr.bf16.mxu0 0
    %1090 = vmatpush2.bf16.msra.mxu0 0
    %1091 = vmatprep.subr.bf16.mxu0 0
    %1092 = vmatpush2.bf16.msra.mxu0 0
    %1093 = vmatprep.subr.bf16.mxu0 0
    %1094 = vmatpush2.bf16.msra.mxu0 0
    %1095 = vmatprep.subr.bf16.mxu0 0
    %1096 = vmatpush2.bf16.msra.mxu0 0
    %1097 = vmatprep.subr.bf16.mxu0 0
    %1098 = vmatpush2.bf16.msra.mxu0 0
    %1099 = vmatprep.subr.bf16.mxu0 0
    %1100 = vmatpush2.bf16.msra.mxu0 0
    %1101 = vmatprep.mubr.bf16.mxu0 0
    %1102 = vmatmul.mubr.bf16.gmra.mxu0 %v1067
    %v1103 = vpop.f32.mrf.mxu0
    %v1104 = vadd.f32 0.0, %v1103
    %v1105 = vpop.f32.mrf.mxu0
    %v1106 = vpop.f32.mrf.mxu0
    %v1107 = vadd.f32 0.0, %v1106
    %v1108 = vpop.f32.mrf.mxu0
    %1109 = vdwg.mxu0
    %1110 = vst.msk [vmem:[#allocation8] sm:$0xff] %vm86, %v1104
    %1111 = vst.msk [vmem:[#allocation8 + $0x8] sm:$0xff] %vm86, %v1107
    // Predicated region
    $region26: #{tpu_custom_call.1} parent=1 // pred_check
      _
    $region27: #{tpu_custom_call.1} parent=1 // pred_check_branch
      %1113 = sbr.rel (0) target = $region29
    $region28: #{tpu_custom_call.1} parent=1 // pred_region
      %s1115 = ssub.s32 256, 256
      %1116 = vsyncadd [#allocation4], %s1115
      %s1117 = sshll.u32 [#allocation8], 4
      %s1118 = int_to_ptr.vmem [resolvable:$true] %s1117
      %1123 = dma.vmem_to_hbm [thread:$0]  %s1118, 256, %s3, [#allocation4], 128, 128, 8
    $region29: #{tpu_custom_call.1} parent=1 // pred_fallthru
      _
    // Predicated region
    $region30: #{tpu_custom_call.1} parent=1 // pred_check
      _
    $region31: #{tpu_custom_call.1} parent=1 // pred_check_branch
      %1125 = sbr.rel (0) target = $region33
    $region32: #{tpu_custom_call.1} parent=1 // pred_region
      %1126 = dma.done [#allocation4], 256
    $region33: #{tpu_custom_call.1} parent=1 // pred_fallthru
      _
    %1127 = vsyncpa [#allocation3], 1
    %1128 = vsyncpa [#allocation6], 1
    %1129 = vsyncpa [#allocation4], 1

</llo_original>
